<compile_context>
chip_gen: v5e
topology: v5e:2x2
jax: 0.10.0
libtpu: 0.0.40
codegen_flags: <defaults>
</compile_context>

<pallas_src>
import numpy as np
import jax
import jax.numpy as jnp
from jax.experimental import pallas as pl
from jax.experimental.pallas import tpu as pltpu

# ----------------------------- constants ------------------------------------
NUM_JOINTS = 24            # 1 root + 23 body joints
NUM_BODY_JOINTS = 23
NUM_BETAS = 10
NUM_VERTS = 128            # synthetic small mesh (real SMPL: 6890)
POSE_FEAT = NUM_BODY_JOINTS * 9          # 207
D_FLAT = NUM_VERTS * 3                   # 384

SMPL_PARENTS = np.array(
    [-1, 0, 0, 0, 1, 2, 3, 4, 5, 6, 7, 8, 9, 9, 9, 12, 13, 14, 16, 17, 18,
     19, 20, 21], dtype=np.int32)


def _round_up(x, m):
    return ((x + m - 1) // m) * m


# --------------------------- Pallas kernel 1 ---------------------------------
# One fused MXU matmul produces v_posed in planar-flat layout (B, 3V); the
# joint locations come from a tiny precomputed-regression matmul.
def _blend_kernel(lhs_ref, betas_ref, W_ref, vt_ref, shapeJ_ref, jt_ref,
                  vposed_ref, jflat_ref):
    # [betas | pose_feature] @ [shapedirs_planar ; posedirs_planar] + v_template
    vposed_ref[...] = vt_ref[...] + jnp.dot(
        lhs_ref[...], W_ref[...], preferred_element_type=jnp.float32)

    @pl.when(pl.program_id(0) == 0)
    def _():
        # J = J_regressor @ v_shaped  ==  J_template + betas @ (Jreg @ shapedirs)
        jflat_ref[...] = jt_ref[...] + jnp.dot(
            betas_ref[...], shapeJ_ref[...], preferred_element_type=jnp.float32)


def blend_stage(lhs, betas, W, vt, shape_J, j_template, *, td=1536):
    """lhs (B, nb+207), W (nb+207, 3V planar), vt (1, 3V planar)."""
    B, K = lhs.shape
    D = W.shape[1]
    nb = betas.shape[1]
    nj3 = j_template.shape[1]

    td = min(td, _round_up(D, 128))          # single grid step at toy size
    Dp = _round_up(D, td)
    if Dp != D:                               # real-mesh guard (V*3 % 128 != 0)
        W = jnp.pad(W, ((0, 0), (0, Dp - D)))
        vt = jnp.pad(vt, ((0, 0), (0, Dp - D)))
    grid = (Dp // td,)

    vposed, jflat = pl.pallas_call(
        _blend_kernel,
        out_shape=(jax.ShapeDtypeStruct((B, Dp), jnp.float32),
                   jax.ShapeDtypeStruct((B, nj3), jnp.float32)),
        grid_spec=pltpu.PrefetchScalarGridSpec(
            num_scalar_prefetch=0,
            grid=grid,
            in_specs=[
                pl.BlockSpec((B, K), lambda d: (0, 0)),
                pl.BlockSpec((B, nb), lambda d: (0, 0)),
                pl.BlockSpec((K, td), lambda d: (0, d)),
                pl.BlockSpec((1, td), lambda d: (0, d)),
                pl.BlockSpec((nb, nj3), lambda d: (0, 0)),
                pl.BlockSpec((1, nj3), lambda d: (0, 0)),
            ],
            out_specs=(
                pl.BlockSpec((B, td), lambda d: (0, d)),
                pl.BlockSpec((B, nj3), lambda d: (0, 0)),
            ),
        ),
        # jflat block is shared across the D-tiling axis -> keep "arbitrary".
        compiler_params=pltpu.CompilerParams(
            dimension_semantics=("arbitrary",)),
    )(lhs, betas, W, vt, shape_J, j_template)

    if Dp != D:
        vposed = vposed[:, :D]
    return vposed, jflat


# --------------------------- Pallas kernel 2 ---------------------------------
# Linear blend skinning in planar layout: vertices on the lane axis.
def _skin_kernel(A2d_ref, wT_ref, vp_ref, transl_ref, out_ref):
    # One MXU matmul for every batch & transform element:
    # (B*16, 24) @ (24, tv) -> (B*16, tv), vertex index lane-dense.
    T_all = jnp.dot(A2d_ref[...], wT_ref[...],
                    preferred_element_type=jnp.float32)
    Bsz = vp_ref.shape[0]
    for b in range(Bsz):                       # B is small & static: VPU FMAs only
        Tb = T_all[b * 16:(b + 1) * 16]        # (16, tv)  static sublane slice
        vp = vp_ref[b]                         # (3, tv)
        x, y, z = vp[0:1, :], vp[1:2, :], vp[2:3, :]
        vx = Tb[0:1] * x + Tb[1:2] * y + Tb[2:3] * z + Tb[3:4]
        vy = Tb[4:5] * x + Tb[5:6] * y + Tb[6:7] * z + Tb[7:8]
        vz = Tb[8:9] * x + Tb[9:10] * y + Tb[10:11] * z + Tb[11:12]
        verts = jnp.concatenate([vx, vy, vz], axis=0)          # (3, tv)
        out_ref[b] = verts + transl_ref[b]                     # (3,1) bcast on lanes


def skinning_stage(wT, A2d, vp_planar, transl, *, tv=1024):
    """wT (24, V), A2d (B*16, 24), vp_planar (B, 3, V), transl (B, 3)."""
    nj, V = wT.shape
    B = vp_planar.shape[0]

    tv = min(tv, _round_up(V, 128))            # single grid step at toy size
    Vp = _round_up(V, tv)
    if Vp != V:                                 # real-mesh guard (V=6890)
        wT = jnp.pad(wT, ((0, 0), (0, Vp - V)))
        vp_planar = jnp.pad(vp_planar, ((0, 0), (0, 0), (0, Vp - V)))
    grid = (Vp // tv,)
    transl_col = transl[:, :, None]             # (B, 3, 1)

    out = pl.pallas_call(
        _skin_kernel,
        out_shape=jax.ShapeDtypeStruct((B, 3, Vp), jnp.float32),
        grid_spec=pltpu.PrefetchScalarGridSpec(
            num_scalar_prefetch=0,
            grid=grid,
            in_specs=[
                pl.BlockSpec((B * 16, nj), lambda i: (0, 0)),
                pl.BlockSpec((nj, tv), lambda i: (0, i)),
                pl.BlockSpec((B, 3, tv), lambda i: (0, 0, i)),
                pl.BlockSpec((B, 3, 1), lambda i: (0, 0, 0)),
            ],
            out_specs=pl.BlockSpec((B, 3, tv), lambda i: (0, 0, i)),
        ),
        compiler_params=pltpu.CompilerParams(
            dimension_semantics=("parallel",)),
    )(A2d, wT, vp_planar, transl_col)

    if Vp != V:
        out = out[:, :, :V]
    return out


# --------------------------- JAX glue (tiny ops) ------------------------------
def batch_rodrigues(rot_vecs):
    """Axis-angle (N,3) -> rotation matrices (N,3,3). Matches smplx."""
    angle = jnp.linalg.norm(rot_vecs + 1e-8, axis=1, keepdims=True)     # (N,1)
    rot_dir = rot_vecs / angle
    cos = jnp.cos(angle)[:, None, :]                                    # (N,1,1)
    sin = jnp.sin(angle)[:, None, :]
    rx, ry, rz = rot_dir[:, 0], rot_dir[:, 1], rot_dir[:, 2]
    zeros = jnp.zeros_like(rx)
    K = jnp.stack([zeros, -rz, ry, rz, zeros, -rx, -ry, rx, zeros],
                  axis=1).reshape(-1, 3, 3)
    ident = jnp.eye(3, dtype=rot_vecs.dtype)[None]
    return ident + sin * K + (1.0 - cos) * jnp.matmul(K, K)


def batch_rigid_transform(rot_mats, joints, parents):
    """Kinematic chain. rot_mats (B,N,3,3), joints (B,N,3)."""
    B, N = joints.shape[:2]
    rel_joints = joints.at[:, 1:].add(-joints[:, parents[1:]])
    top = jnp.concatenate([rot_mats, rel_joints[..., None]], axis=-1)   # (B,N,3,4)
    bottom = jnp.broadcast_to(
        jnp.array([0.0, 0.0, 0.0, 1.0], dtype=joints.dtype), (B, N, 1, 4))
    transforms_mat = jnp.concatenate([top, bottom], axis=-2)            # (B,N,4,4)
    chain = [transforms_mat[:, 0]]
    for i in range(1, N):                      # 24 joints, sequential & tiny
        chain.append(jnp.matmul(chain[int(parents[i])], transforms_mat[:, i]))
    transforms = jnp.stack(chain, axis=1)                               # (B,N,4,4)
    posed_joints = transforms[:, :, :3, 3]
    rot_j = jnp.einsum('bnij,bnj->bni', transforms[:, :, :3, :3], joints)
    rel_transforms = transforms.at[:, :, :3, 3].add(-rot_j)
    return posed_joints, rel_transforms


# ----------------------------- SMPL layer ------------------------------------
class SMPLLayerPallas:
    def __init__(self, num_betas=NUM_BETAS, num_verts=NUM_VERTS, seed=0):
        keys = jax.random.split(jax.random.PRNGKey(seed), 5)
        V = num_verts
        self.num_betas = num_betas
        self.num_verts = V
        self.parents = SMPL_PARENTS
        self.v_template = jax.random.normal(keys[0], (V, 3), jnp.float32) * 0.5
        self.shapedirs = jax.random.normal(keys[1], (V, 3, num_betas),
                                           jnp.float32) * 0.01
        # stored like the torch buffer: rearranged 'v c h -> h (v c)'
        self.posedirs = jax.random.normal(keys[2], (POSE_FEAT, V * 3),
                                          jnp.float32) * 0.01
        jr = jax.random.uniform(keys[3], (NUM_JOINTS, V), jnp.float32)
        self.J_regressor = jr / jnp.sum(jr, axis=1, keepdims=True)
        lw = jax.random.normal(keys[4], (V, NUM_JOINTS), jnp.float32)
        self.lbs_weights = jax.nn.softmax(lw, axis=1)

        # --------- kernel-friendly precomputed views (planar = c*V + v) -------
        # shape-blend dirs: (V,3,nb) -> (nb, 3V) planar columns
        sd_planar = jnp.transpose(self.shapedirs, (2, 1, 0)).reshape(
            num_betas, 3 * V)
        # pose-blend dirs: (207, V*3 interleaved) -> (207, 3V) planar columns
        pd_planar = self.posedirs.reshape(POSE_FEAT, V, 3).transpose(
            0, 2, 1).reshape(POSE_FEAT, 3 * V)
        # fused RHS for the single blend matmul: [betas | pose_feature] @ W
        self.W_blend = jnp.concatenate([sd_planar, pd_planar], axis=0)  # (217,3V)
        self.vt_planar = self.v_template.T.reshape(1, 3 * V)            # (1, 3V)
        # joint regression folded through the shape blend (linear):
        #   J = Jreg @ v_template  +  betas @ (Jreg @ shapedirs)
        self.shape_J = jnp.einsum('jv,vcl->ljc', self.J_regressor,
                                  self.shapedirs).reshape(num_betas,
                                                          NUM_JOINTS * 3)
        self.J_template = jnp.einsum('jv,vc->jc', self.J_regressor,
                                     self.v_template).reshape(1, NUM_JOINTS * 3)
        # skinning weights with vertices on the lane axis
        self.lbs_weights_T = self.lbs_weights.T                         # (24, V)
        # TODO(synk): at real SMPL size on v6e/v7x, cast W_blend /
        # lbs_weights_T to bf16 for the MXU (f32 accumulate) and set
        # vmem_limit_bytes explicitly; kept f32 here to hold 1e-4 tolerance.

    def __call__(self, transl=None, orient=None, betas=None, body_pose=None,
                 batch_size=1, apply_trans=True):
        B = batch_size
        for item in (transl, orient, body_pose, betas):
            if item is not None:
                B = item.shape[0]
                break
        if transl is None:
            transl = jnp.zeros((B, 3), jnp.float32)
        if orient is None:
            orient = jnp.zeros((B, 3), jnp.float32)
        if betas is None:
            betas = jnp.zeros((B, self.num_betas), jnp.float32)
        elif betas.shape[0] != B and betas.shape[0] == 1:
            betas = jnp.broadcast_to(betas, (B, self.num_betas))
        if body_pose is None:
            body_pose = jnp.zeros((B, NUM_BODY_JOINTS * 3), jnp.float32)

        full_pose = jnp.concatenate([orient, body_pose], axis=1)        # (B,72)
        rot_mats = batch_rodrigues(full_pose.reshape(-1, 3)).reshape(
            B, NUM_JOINTS, 3, 3)
        pose_feature = (rot_mats[:, 1:] -
                        jnp.eye(3, dtype=jnp.float32)).reshape(B, POSE_FEAT)
        lhs = jnp.concatenate([betas, pose_feature], axis=1)            # (B,217)

        # Pallas stage 1: fused shape+pose blend (+ tiny joint regression)
        v_posed_flat, j_flat = blend_stage(
            lhs, betas, self.W_blend, self.vt_planar,
            self.shape_J, self.J_template)
        vp_planar = v_posed_flat.reshape(B, 3, self.num_verts)          # free
        J = j_flat.reshape(B, NUM_JOINTS, 3)

        # TODO(synk): 24-joint sequential kinematic chain + Rodrigues stay in
        # plain JAX (tiny, inherently sequential) rather than in the kernel.
        posed_joints, rel_transforms = batch_rigid_transform(
            rot_mats, J, self.parents)
        # A2d[b*16 + (i*4+j), k] = A[b, k, i, j]
        A2d = jnp.transpose(rel_transforms.reshape(B, NUM_JOINTS, 16),
                            (0, 2, 1)).reshape(B * 16, NUM_JOINTS)

        transl_eff = transl if apply_trans else jnp.zeros_like(transl)
        # Pallas stage 2: linear blend skinning (+ translation), planar output
        verts_planar = skinning_stage(self.lbs_weights_T, A2d, vp_planar,
                                      transl_eff)                       # (B,3,V)
        vertices = jnp.transpose(verts_planar, (0, 2, 1))               # (B,V,3)
        joints = posed_joints + transl_eff[:, None, :]
        return vertices, joints


# --------------------------- pure-JAX reference -------------------------------
def lbs_reference(layer, transl, orient, betas, body_pose):
    B = betas.shape[0]
    full_pose = jnp.concatenate([orient, body_pose], axis=1)
    rot_mats = batch_rodrigues(full_pose.reshape(-1, 3)).reshape(
        B, NUM_JOINTS, 3, 3)
    v_shaped = layer.v_template[None] + jnp.einsum(
        'bl,vkl->bvk', betas, layer.shapedirs)
    J = jnp.einsum('jv,bvk->bjk', layer.J_regressor, v_shaped)
    pose_feature = (rot_mats[:, 1:] -
                    jnp.eye(3, dtype=jnp.float32)).reshape(B, POSE_FEAT)
    pose_offsets = (pose_feature @ layer.posedirs).reshape(B, -1, 3)
    v_posed = v_shaped + pose_offsets
    posed_joints, A = batch_rigid_transform(rot_mats, J, layer.parents)
    T = jnp.einsum('vj,bjmn->bvmn', layer.lbs_weights, A)
    v_homo = jnp.concatenate([v_posed, jnp.ones_like(v_posed[..., :1])],
                             axis=-1)
    verts = jnp.einsum('bvmn,bvn->bvm', T, v_homo)[..., :3]
    return verts + transl[:, None], posed_joints + transl[:, None]


# ----------------------------------- main -------------------------------------
if __name__ == "__main__":
    layer = SMPLLayerPallas()

    key = jax.random.PRNGKey(0)
    k1, k2, k3, k4 = jax.random.split(key, 4)
    B = 2
    transl = jax.random.normal(k1, (B, 3), jnp.float32) * 0.1
    orient = jax.random.normal(k2, (B, 3), jnp.float32) * 0.3
    betas = jax.random.normal(k3, (B, NUM_BETAS), jnp.float32)
    body_pose = jax.random.normal(k4, (B, NUM_BODY_JOINTS * 3),
                                  jnp.float32) * 0.2

    vertices, joints = layer(transl, orient, betas, body_pose)
    jax.block_until_ready(vertices)
    jax.block_until_ready(joints)

    v_ref, j_ref = lbs_reference(layer, transl, orient, betas, body_pose)
    assert vertices.shape == (B, NUM_VERTS, 3) and joints.shape == (B, NUM_JOINTS, 3)
    assert np.allclose(np.asarray(vertices), np.asarray(v_ref),
                       atol=1e-4, rtol=1e-4)
    assert np.allclose(np.asarray(joints), np.asarray(j_ref),
                       atol=1e-4, rtol=1e-4)
    print("KERNEL_OK")
</pallas_src>

<mosaic_0001>
module attributes {stable_mosaic.version = 11 : i64} {
  func.func @_blend_kernel(%arg0: i32, %arg1: memref<2x217xf32, #tpu.memory_space<vmem>>, %arg2: memref<2x10xf32, #tpu.memory_space<vmem>>, %arg3: memref<217x384xf32, #tpu.memory_space<vmem>>, %arg4: memref<1x384xf32, #tpu.memory_space<vmem>>, %arg5: memref<10x72xf32, #tpu.memory_space<vmem>>, %arg6: memref<1x72xf32, #tpu.memory_space<vmem>>, %arg7: memref<2x384xf32, #tpu.memory_space<vmem>>, %arg8: memref<2x72xf32, #tpu.memory_space<vmem>>) attributes {dimension_semantics = [#tpu.dimension_semantics<arbitrary>], iteration_bounds = array<i64: 1>, scalar_prefetch = 0 : i64, scratch_operands = 0 : i64, tpu.core_type = #tpu.core_type<tc>, window_params = [{pipeline_mode = #tpu.pipeline_mode<synchronous>, transform_indices = @transform_0, window_bounds = array<i64: 2, 217>}, {pipeline_mode = #tpu.pipeline_mode<synchronous>, transform_indices = @transform_1, window_bounds = array<i64: 2, 10>}, {transform_indices = @transform_2, window_bounds = array<i64: 217, 384>}, {transform_indices = @transform_3, window_bounds = array<i64: 1, 384>}, {pipeline_mode = #tpu.pipeline_mode<synchronous>, transform_indices = @transform_4, window_bounds = array<i64: 10, 72>}, {pipeline_mode = #tpu.pipeline_mode<synchronous>, transform_indices = @transform_5, window_bounds = array<i64: 1, 72>}, {transform_indices = @transform_6, window_bounds = array<i64: 2, 384>}, {pipeline_mode = #tpu.pipeline_mode<synchronous>, transform_indices = @transform_7, window_bounds = array<i64: 2, 72>}]} {
    %c0 = arith.constant 0 : index
    %c0_0 = arith.constant 0 : index
    %0 = vector.load %arg4[%c0, %c0_0] : memref<1x384xf32, #tpu.memory_space<vmem>>, vector<1x384xf32>
    %c0_1 = arith.constant 0 : index
    %c0_2 = arith.constant 0 : index
    %1 = vector.load %arg1[%c0_1, %c0_2] : memref<2x217xf32, #tpu.memory_space<vmem>>, vector<2x217xf32>
    %c0_3 = arith.constant 0 : index
    %c0_4 = arith.constant 0 : index
    %2 = vector.load %arg3[%c0_3, %c0_4] : memref<217x384xf32, #tpu.memory_space<vmem>>, vector<217x384xf32>
    %cst = arith.constant dense<0.000000e+00> : vector<2x384xf32>
    %3 = tpu.matmul %1, %2, %cst {dimension_numbers = #tpu.dot_dimension_numbers<[1], [0], [0], [1], [0, 0, 1, 1], [], []>} : vector<2x217xf32>, vector<217x384xf32>, vector<2x384xf32> -> vector<2x384xf32>
    %4 = vector.broadcast %0 : vector<1x384xf32> to vector<2x384xf32>
    %5 = arith.addf %4, %3 : vector<2x384xf32>
    %c0_5 = arith.constant 0 : index
    %c0_6 = arith.constant 0 : index
    %6 = vector.load %arg7[%c0_5, %c0_6] : memref<2x384xf32, #tpu.memory_space<vmem>>, vector<2x384xf32>
    tpu.vector_store %arg7[%c0_5, %c0_6], %5 {strides = array<i32>} : memref<2x384xf32, #tpu.memory_space<vmem>>, vector<2x384xf32>,
    %c0_i32 = arith.constant 0 : i32
    %7 = arith.cmpi eq, %arg0, %c0_i32 : i32
    %8 = arith.extui %7 : i1 to i32
    %c0_i32_7 = arith.constant 0 : i32
    %9 = arith.cmpi ne, %8, %c0_i32_7 : i32
    scf.if %9 {
      %c0_8 = arith.constant 0 : index
      %c0_9 = arith.constant 0 : index
      %10 = vector.load %arg6[%c0_8, %c0_9] : memref<1x72xf32, #tpu.memory_space<vmem>>, vector<1x72xf32>
      %c0_10 = arith.constant 0 : index
      %c0_11 = arith.constant 0 : index
      %11 = vector.load %arg2[%c0_10, %c0_11] : memref<2x10xf32, #tpu.memory_space<vmem>>, vector<2x10xf32>
      %c0_12 = arith.constant 0 : index
      %c0_13 = arith.constant 0 : index
      %12 = vector.load %arg5[%c0_12, %c0_13] : memref<10x72xf32, #tpu.memory_space<vmem>>, vector<10x72xf32>
      %cst_14 = arith.constant dense<0.000000e+00> : vector<2x72xf32>
      %13 = tpu.matmul %11, %12, %cst_14 {dimension_numbers = #tpu.dot_dimension_numbers<[1], [0], [0], [1], [0, 0, 1, 1], [], []>} : vector<2x10xf32>, vector<10x72xf32>, vector<2x72xf32> -> vector<2x72xf32>
      %14 = vector.broadcast %10 : vector<1x72xf32> to vector<2x72xf32>
      %15 = arith.addf %14, %13 : vector<2x72xf32>
      %c0_15 = arith.constant 0 : index
      %c0_16 = arith.constant 0 : index
      %16 = vector.load %arg8[%c0_15, %c0_16] : memref<2x72xf32, #tpu.memory_space<vmem>>, vector<2x72xf32>
      tpu.vector_store %arg8[%c0_15, %c0_16], %15 {strides = array<i32>} : memref<2x72xf32, #tpu.memory_space<vmem>>, vector<2x72xf32>,
    } else {
    }
    return
  }
  func.func @transform_0(%arg0: i32) -> (i32, i32) {
    %c0_i32 = arith.constant 0 : i32
    %c0_i32_0 = arith.constant 0 : i32
    %c0_i32_1 = arith.constant 0 : i32
    return %c0_i32, %c0_i32_0 : i32, i32
  }
  func.func @transform_1(%arg0: i32) -> (i32, i32) {
    %c0_i32 = arith.constant 0 : i32
    %c0_i32_0 = arith.constant 0 : i32
    %c0_i32_1 = arith.constant 0 : i32
    return %c0_i32, %c0_i32_0 : i32, i32
  }
  func.func @transform_2(%arg0: i32) -> (i32, i32) {
    %c0_i32 = arith.constant 0 : i32
    %c0_i32_0 = arith.constant 0 : i32
    return %c0_i32, %arg0 : i32, i32
  }
  func.func @transform_3(%arg0: i32) -> (i32, i32) {
    %c0_i32 = arith.constant 0 : i32
    %c0_i32_0 = arith.constant 0 : i32
    return %c0_i32, %arg0 : i32, i32
  }
  func.func @transform_4(%arg0: i32) -> (i32, i32) {
    %c0_i32 = arith.constant 0 : i32
    %c0_i32_0 = arith.constant 0 : i32
    %c0_i32_1 = arith.constant 0 : i32
    return %c0_i32, %c0_i32_0 : i32, i32
  }
  func.func @transform_5(%arg0: i32) -> (i32, i32) {
    %c0_i32 = arith.constant 0 : i32
    %c0_i32_0 = arith.constant 0 : i32
    %c0_i32_1 = arith.constant 0 : i32
    return %c0_i32, %c0_i32_0 : i32, i32
  }
  func.func @transform_6(%arg0: i32) -> (i32, i32) {
    %c0_i32 = arith.constant 0 : i32
    %c0_i32_0 = arith.constant 0 : i32
    return %c0_i32, %arg0 : i32, i32
  }
  func.func @transform_7(%arg0: i32) -> (i32, i32) {
    %c0_i32 = arith.constant 0 : i32
    %c0_i32_0 = arith.constant 0 : i32
    %c0_i32_1 = arith.constant 0 : i32
    return %c0_i32, %c0_i32_0 : i32, i32
  }
}

</mosaic_0001>

<llo_original>
// kernel: tpu_custom_call.1
$region0: #{tpu_custom_call.1}
  #allocation0 [shape = 'u32[]', space=smem, size = 0x4, offset = 0x4, fixed_abs, tag = 'smem constant byte address 0x4 - core index']
  #allocation1 [shape = 'u32[72,128]{1,0:T(1,128)}', space=vmem, size = 0x9000, scoped, tag = 'internal scratch']
  %s0 = inlined_call_operand.hbm [shape: f32[2,217], index: 0, kind: input, shape index: {}]
  %s1 = inlined_call_operand.hbm [shape: f32[2,10], index: 1, kind: input, shape index: {}]
  %s2 = inlined_call_operand.hbm [shape: f32[217,384], index: 2, kind: input, shape index: {}]
  %s3 = inlined_call_operand.hbm [shape: f32[1,384], index: 3, kind: input, shape index: {}]
  %s4 = inlined_call_operand.hbm [shape: f32[10,72], index: 4, kind: input, shape index: {}]
  %s5 = inlined_call_operand.vmem [shape: f32[1,72], index: 5, kind: input, shape index: {}]
  %s6 = inlined_call_operand.hbm [shape: f32[2,384], index: 6, kind: output, shape index: {0}]
  %s7 = inlined_call_operand.hbm [shape: f32[2,72], index: 7, kind: output, shape index: {1}]
  %8 = xla_tuple %s6, %s7
  %s9 = sld [smem:[#allocation0]]
  $region66: #{tpu_custom_call.1} parent=0
    _
  %s11 = ssub.s32 1, %s9
  %s12 = scalar_select 0, %s11, %s9
  $region1: #{tpu_custom_call.1} parent=0
    #allocation2 [shape = 'u8[2048]{0}', space=vmem, size = 0x800, scoped, tag = 'input window, operand 0, single buffered']
    #allocation3 [shape = 's32[1]{0}', space=sflag, size = 0x4, scoped, tag = 'scoped memory for tpu_custom_call.1']
    #allocation4 [shape = 's32[1]{0}', space=sflag, size = 0x4, scoped, tag = 'scoped memory for tpu_custom_call.1']
    #allocation5 [shape = 'u8[1024]{0}', space=vmem, size = 0x400, scoped, tag = 'input window, operand 1, single buffered']
    #allocation6 [shape = 's32[1]{0}', space=sflag, size = 0x4, scoped, tag = 'scoped memory for tpu_custom_call.1']
    #allocation7 [shape = 'u8[344064]{0}', space=vmem, size = 0x54000, scoped, tag = 'input window, operand 2, single buffered']
    #allocation8 [shape = 'u8[1536]{0}', space=vmem, size = 0x800, scoped, tag = 'input window, operand 3, single buffered']
    #allocation9 [shape = 's32[1]{0}', space=sflag, size = 0x4, scoped, tag = 'scoped memory for tpu_custom_call.1']
    #allocation10 [shape = 'u8[8192]{0}', space=vmem, size = 0x2000, scoped, tag = 'input window, operand 4, single buffered']
    #allocation11 [shape = 'u8[3072]{0}', space=vmem, size = 0xc00, scoped, tag = 'output window, operand 0, single buffered']
    #allocation12 [shape = 'u8[1024]{0}', space=vmem, size = 0x400, scoped, tag = 'output window, operand 1, single buffered']
    #allocation13 [shape = 's32[1]{0}', space=sflag, size = 0x4, scoped, tag = 'scoped memory for tpu_custom_call.1']
    %13 = vsyncpa [#allocation3], 0
    %14 = vsyncpa [#allocation6], 0
    %15 = vsyncpa [#allocation9], 0
    %16 = vsyncpa [#allocation4], 0
    %17 = vsyncpa [#allocation13], 0
    // Predicated region
    $region2: #{tpu_custom_call.1} parent=1 // pred_check
      _
    $region3: #{tpu_custom_call.1} parent=1 // pred_check_branch
      %19 = sbr.rel (0) target = $region5
    $region4: #{tpu_custom_call.1} parent=1 // pred_region
      %21 = vsyncadd [#allocation3], 0
      %s23 = sshll.u32 %s0, 4
      %s24 = int_to_ptr.hbm [resolvable:$true] %s23
      %s25 = sshll.u32 [#allocation2], 4
      %s26 = int_to_ptr.vmem [resolvable:$true] %s25
      %28 = dma.hbm_to_vmem [thread:$0]  %s24, 64, %s26, [#allocation3]
    $region5: #{tpu_custom_call.1} parent=1 // pred_fallthru
      _
    // Predicated region
    $region6: #{tpu_custom_call.1} parent=1 // pred_check
      _
    $region7: #{tpu_custom_call.1} parent=1 // pred_check_branch
      %30 = sbr.rel (0) target = $region9
    $region8: #{tpu_custom_call.1} parent=1 // pred_region
      %32 = vsyncadd [#allocation6], 0
      %s34 = sshll.u32 %s1, 4
      %s35 = int_to_ptr.hbm [resolvable:$true] %s34
      %s36 = sshll.u32 [#allocation5], 4
      %s37 = int_to_ptr.vmem [resolvable:$true] %s36
      %39 = dma.hbm_to_vmem [thread:$0]  %s35, 32, %s37, [#allocation6]
    $region9: #{tpu_custom_call.1} parent=1 // pred_fallthru
      _
    // Predicated region
    $region10: #{tpu_custom_call.1} parent=1 // pred_check
      _
    $region11: #{tpu_custom_call.1} parent=1 // pred_check_branch
      %41 = sbr.rel (0) target = $region13
    $region12: #{tpu_custom_call.1} parent=1 // pred_region
      %43 = vsyncadd [#allocation6], 0
      %s44 = sshll.u32 %s2, 4
      %s45 = int_to_ptr.hbm [resolvable:$true] %s44
      %s46 = sshll.u32 [#allocation7], 4
      %s47 = int_to_ptr.vmem [resolvable:$true] %s46
      %52 = dma.hbm_to_vmem [thread:$0]  %s45, 10752, %s47, [#allocation6], 384, 384, 24
    $region13: #{tpu_custom_call.1} parent=1 // pred_fallthru
      _
    // Predicated region
    $region14: #{tpu_custom_call.1} parent=1 // pred_check
      _
    $region15: #{tpu_custom_call.1} parent=1 // pred_check_branch
      %54 = sbr.rel (0) target = $region17
    $region16: #{tpu_custom_call.1} parent=1 // pred_region
      %56 = vsyncadd [#allocation9], 0
      %s58 = sshll.u32 %s3, 4
      %s59 = int_to_ptr.hbm [resolvable:$true] %s58
      %s60 = sshll.u32 [#allocation8], 4
      %s61 = int_to_ptr.vmem [resolvable:$true] %s60
      %63 = dma.hbm_to_vmem [thread:$0]  %s59, 48, %s61, [#allocation9]
    $region17: #{tpu_custom_call.1} parent=1 // pred_fallthru
      _
    // Predicated region
    $region18: #{tpu_custom_call.1} parent=1 // pred_check
      _
    $region19: #{tpu_custom_call.1} parent=1 // pred_check_branch
      %65 = sbr.rel (0) target = $region21
    $region20: #{tpu_custom_call.1} parent=1 // pred_region
      %67 = vsyncadd [#allocation9], 0
      %s68 = sshll.u32 %s4, 4
      %s69 = int_to_ptr.hbm [resolvable:$true] %s68
      %s70 = sshll.u32 [#allocation10], 4
      %s71 = int_to_ptr.vmem [resolvable:$true] %s70
      %76 = dma.hbm_to_vmem [thread:$0]  %s69, 256, %s71, [#allocation9], 128, 128, 8
    $region21: #{tpu_custom_call.1} parent=1 // pred_fallthru
      _
    // Predicated region
    $region22: #{tpu_custom_call.1} parent=1 // pred_check
      _
    $region23: #{tpu_custom_call.1} parent=1 // pred_check_branch
      %78 = sbr.rel (0) target = $region25
    $region24: #{tpu_custom_call.1} parent=1 // pred_region
      _
    $region25: #{tpu_custom_call.1} parent=1 // pred_fallthru
      _
    // Predicated region
    $region26: #{tpu_custom_call.1} parent=1 // pred_check
      _
    $region27: #{tpu_custom_call.1} parent=1 // pred_check_branch
      %80 = sbr.rel (0) target = $region29
    $region28: #{tpu_custom_call.1} parent=1 // pred_region
      %82 = dma.done [#allocation3], 64
    $region29: #{tpu_custom_call.1} parent=1 // pred_fallthru
      _
    // Predicated region
    $region30: #{tpu_custom_call.1} parent=1 // pred_check
      _
    $region31: #{tpu_custom_call.1} parent=1 // pred_check_branch
      %84 = sbr.rel (0) target = $region33
    $region32: #{tpu_custom_call.1} parent=1 // pred_region
      %86 = dma.done [#allocation6], 32
    $region33: #{tpu_custom_call.1} parent=1 // pred_fallthru
      _
    // Predicated region
    $region34: #{tpu_custom_call.1} parent=1 // pred_check
      _
    $region35: #{tpu_custom_call.1} parent=1 // pred_check_branch
      %88 = sbr.rel (0) target = $region37
    $region36: #{tpu_custom_call.1} parent=1 // pred_region
      %90 = dma.done [#allocation6], 10752
    $region37: #{tpu_custom_call.1} parent=1 // pred_fallthru
      _
    // Predicated region
    $region38: #{tpu_custom_call.1} parent=1 // pred_check
      _
    $region39: #{tpu_custom_call.1} parent=1 // pred_check_branch
      %92 = sbr.rel (0) target = $region41
    $region40: #{tpu_custom_call.1} parent=1 // pred_region
      %94 = dma.done [#allocation9], 48
    $region41: #{tpu_custom_call.1} parent=1 // pred_fallthru
      _
    // Predicated region
    $region42: #{tpu_custom_call.1} parent=1 // pred_check
      _
    $region43: #{tpu_custom_call.1} parent=1 // pred_check_branch
      %96 = sbr.rel (0) target = $region45
    $region44: #{tpu_custom_call.1} parent=1 // pred_region
      %98 = dma.done [#allocation9], 256
    $region45: #{tpu_custom_call.1} parent=1 // pred_fallthru
      _
    %v99 = vld [vmem:[#allocation8] sm:$0x7]
    %v100 = vld [vmem:[#allocation2] sm:$0xf]
    %v101 = vld [vmem:[#allocation7] sm:$0xff]
    %v102 = vld [vmem:[#allocation7 + $0x8] sm:$0xff]
    %v103 = vld [vmem:[#allocation7 + $0x10] sm:$0xff]
    %v104 = vld [vmem:[#allocation7 + $0x18] sm:$0xff]
    %v105 = vld [vmem:[#allocation7 + $0x20] sm:$0xff]
    %v106 = vld [vmem:[#allocation7 + $0x28] sm:$0xff]
    %v107 = vld [vmem:[#allocation7 + $0x30] sm:$0xff]
    %v108 = vld [vmem:[#allocation7 + $0x38] sm:$0xff]
    %v109 = vld [vmem:[#allocation7 + $0x40] sm:$0xff]
    %v110 = vld [vmem:[#allocation7 + $0x48] sm:$0xff]
    %v111 = vld [vmem:[#allocation7 + $0x50] sm:$0xff]
    %v112 = vld [vmem:[#allocation7 + $0x58] sm:$0xff]
    %v113 = vld [vmem:[#allocation7 + $0x60] sm:$0xff]
    %v114 = vld [vmem:[#allocation7 + $0x68] sm:$0xff]
    %v115 = vld [vmem:[#allocation7 + $0x70] sm:$0xff]
    %v116 = vld [vmem:[#allocation7 + $0x78] sm:$0xff]
    %v117 = vld [vmem:[#allocation7 + $0x80] sm:$0xff]
    %v118 = vld [vmem:[#allocation7 + $0x88] sm:$0xff]
    %v119 = vld [vmem:[#allocation7 + $0x90] sm:$0xff]
    %v120 = vld [vmem:[#allocation7 + $0x98] sm:$0xff]
    %v121 = vld [vmem:[#allocation7 + $0xa0] sm:$0xff]
    %v122 = vld [vmem:[#allocation7 + $0xa8] sm:$0xff]
    %v123 = vld [vmem:[#allocation7 + $0xb0] sm:$0xff]
    %v124 = vld [vmem:[#allocation7 + $0xb8] sm:$0xff]
    %v125 = vld [vmem:[#allocation7 + $0xc0] sm:$0xff]
    %v126 = vld [vmem:[#allocation7 + $0xc8] sm:$0xff]
    %v127 = vld [vmem:[#allocation7 + $0xd0] sm:$0xff]
    %v128 = vld [vmem:[#allocation7 + $0xd8] sm:$0xff]
    %v129 = vld [vmem:[#allocation7 + $0xe0] sm:$0xff]
    %v130 = vld [vmem:[#allocation7 + $0xe8] sm:$0xff]
    %v131 = vld [vmem:[#allocation7 + $0xf0] sm:$0xff]
    %v132 = vld [vmem:[#allocation7 + $0xf8] sm:$0xff]
    %v133 = vld [vmem:[#allocation7 + $0x100] sm:$0xff]
    %v134 = vld [vmem:[#allocation7 + $0x108] sm:$0xff]
    %v135 = vld [vmem:[#allocation7 + $0x110] sm:$0xff]
    %v136 = vld [vmem:[#allocation7 + $0x118] sm:$0xff]
    %v137 = vld [vmem:[#allocation7 + $0x120] sm:$0xff]
    %v138 = vld [vmem:[#allocation7 + $0x128] sm:$0xff]
    %v139 = vld [vmem:[#allocation7 + $0x130] sm:$0xff]
    %v140 = vld [vmem:[#allocation7 + $0x138] sm:$0xff]
    %v141 = vld [vmem:[#allocation7 + $0x140] sm:$0xff]
    %v142 = vld [vmem:[#allocation7 + $0x148] sm:$0xff]
    %v143 = vld [vmem:[#allocation7 + $0x150] sm:$0xff]
    %v144 = vld [vmem:[#allocation7 + $0x158] sm:$0xff]
    %v145 = vld [vmem:[#allocation7 + $0x160] sm:$0xff]
    %v146 = vld [vmem:[#allocation7 + $0x168] sm:$0xff]
    %v147 = vld [vmem:[#allocation7 + $0x170] sm:$0xff]
    %v148 = vld [vmem:[#allocation7 + $0x178] sm:$0xff]
    %v149 = vld [vmem:[#allocation7 + $0x180] sm:$0xff]
    %v150 = vld [vmem:[#allocation7 + $0x188] sm:$0xff]
    %v151 = vld [vmem:[#allocation7 + $0x190] sm:$0xff]
    %v152 = vld [vmem:[#allocation7 + $0x198] sm:$0xff]
    %v153 = vld [vmem:[#allocation7 + $0x1a0] sm:$0xff]
    %v154 = vld [vmem:[#allocation7 + $0x1a8] sm:$0xff]
    %v155 = vld [vmem:[#allocation7 + $0x1b0] sm:$0xff]
    %v156 = vld [vmem:[#allocation7 + $0x1b8] sm:$0xff]
    %v157 = vld [vmem:[#allocation7 + $0x1c0] sm:$0xff]
    %v158 = vld [vmem:[#allocation7 + $0x1c8] sm:$0xff]
    %v159 = vld [vmem:[#allocation7 + $0x1d0] sm:$0xff]
    %v160 = vld [vmem:[#allocation7 + $0x1d8] sm:$0xff]
    %v161 = vld [vmem:[#allocation7 + $0x1e0] sm:$0xff]
    %v162 = vld [vmem:[#allocation7 + $0x1e8] sm:$0xff]
    %v163 = vld [vmem:[#allocation7 + $0x1f0] sm:$0xff]
    %v164 = vld [vmem:[#allocation7 + $0x1f8] sm:$0xff]
    %v165 = vld [vmem:[#allocation7 + $0x200] sm:$0xff]
    %v166 = vld [vmem:[#allocation7 + $0x208] sm:$0xff]
    %v167 = vld [vmem:[#allocation7 + $0x210] sm:$0xff]
    %v168 = vld [vmem:[#allocation7 + $0x218] sm:$0xff]
    %v169 = vld [vmem:[#allocation7 + $0x220] sm:$0xff]
    %v170 = vld [vmem:[#allocation7 + $0x228] sm:$0xff]
    %v171 = vld [vmem:[#allocation7 + $0x230] sm:$0xff]
    %v172 = vld [vmem:[#allocation7 + $0x238] sm:$0xff]
    %v173 = vld [vmem:[#allocation7 + $0x240] sm:$0xff]
    %v174 = vld [vmem:[#allocation7 + $0x248] sm:$0xff]
    %v175 = vld [vmem:[#allocation7 + $0x250] sm:$0xff]
    %v176 = vld [vmem:[#allocation7 + $0x258] sm:$0xff]
    %v177 = vld [vmem:[#allocation7 + $0x260] sm:$0xff]
    %v178 = vld [vmem:[#allocation7 + $0x268] sm:$0xff]
    %v179 = vld [vmem:[#allocation7 + $0x270] sm:$0xff]
    %v180 = vld [vmem:[#allocation7 + $0x278] sm:$0xff]
    %v181 = vld [vmem:[#allocation7 + $0x280] sm:$0xff]
    %v182 = vld [vmem:[#allocation7 + $0x288] sm:$0x1]
    %v183 = vld [vmem:[#allocation7 + $0x290] sm:$0x1]
    %v184 = vld [vmem:[#allocation7 + $0x298] sm:$0x1]
    %186 = vst [vmem:[#allocation1] ss:$4 sm:$0xff] %v100
    %v187 = vld.sshfl [vmem:[#allocation1] sm:$0xff pattern:$0x73625140]
    %v188 = vld.sshfl [vmem:[#allocation1 + $0x8] sm:$0xff pattern:$0x73625140]
    %vm190 = vcmask 728064
    %v191 = vsel %vm190, %v188, 0
    %vm193 = vcmask 1040384
    %v195 = vsel %vm193, %v182, 0
    %v198 = vsel %vm193, %v183, 0
    %v201 = vsel %vm193, %v184, 0
    %203 = vmatpush.msra.mxu0 %v146
    %204 = vmatpush.msra.mxu0 %v143
    %205 = vmatpush.msra.mxu0 %v140
    %206 = vmatpush.msra.mxu0 %v137
    %207 = vmatpush.msra.mxu0 %v134
    %208 = vmatpush.msra.mxu0 %v131
    %209 = vmatpush.msra.mxu0 %v128
    %210 = vmatpush.msra.mxu0 %v125
    %211 = vmatpush.msra.mxu0 %v122
    %212 = vmatpush.msra.mxu0 %v119
    %213 = vmatpush.msra.mxu0 %v116
    %214 = vmatpush.msra.mxu0 %v113
    %215 = vmatpush.msra.mxu0 %v110
    %216 = vmatpush.msra.mxu0 %v107
    %217 = vmatpush.msra.mxu0 %v104
    %218 = vmatpush.msra.mxu0 %v101
    %219 = vmatmul.f32.gmra.mxu0 %v187
    %v220 = vpop.f32.mrf.mxu0
    %v221 = vadd.f32 0.0, %v220
    %222 = vdwg.mxu0
    %223 = vmatpush.msra.mxu0 0.0
    %224 = vmatpush.msra.mxu0 0.0
    %225 = vmatpush.msra.mxu0 0.0
    %226 = vmatpush.msra.mxu0 0.0
    %227 = vmatpush.msra.mxu0 %v195
    %228 = vmatpush.msra.mxu0 %v179
    %229 = vmatpush.msra.mxu0 %v176
    %230 = vmatpush.msra.mxu0 %v173
    %231 = vmatpush.msra.mxu0 %v170
    %232 = vmatpush.msra.mxu0 %v167
    %233 = vmatpush.msra.mxu0 %v164
    %234 = vmatpush.msra.mxu0 %v161
    %235 = vmatpush.msra.mxu0 %v158
    %236 = vmatpush.msra.mxu0 %v155
    %237 = vmatpush.msra.mxu0 %v152
    %238 = vmatpush.msra.mxu0 %v149
    %239 = vmatmul.f32.gmra.mxu0 %v191
    %v240 = vpop.f32.mrf.mxu0
    %v241 = vadd.f32 %v221, %v240
    %242 = vdwg.mxu0
    %243 = vmatpush.msra.mxu0 %v147
    %244 = vmatpush.msra.mxu0 %v144
    %245 = vmatpush.msra.mxu0 %v141
    %246 = vmatpush.msra.mxu0 %v138
    %247 = vmatpush.msra.mxu0 %v135
    %248 = vmatpush.msra.mxu0 %v132
    %249 = vmatpush.msra.mxu0 %v129
    %250 = vmatpush.msra.mxu0 %v126
    %251 = vmatpush.msra.mxu0 %v123
    %252 = vmatpush.msra.mxu0 %v120
    %253 = vmatpush.msra.mxu0 %v117
    %254 = vmatpush.msra.mxu0 %v114
    %255 = vmatpush.msra.mxu0 %v111
    %256 = vmatpush.msra.mxu0 %v108
    %257 = vmatpush.msra.mxu0 %v105
    %258 = vmatpush.msra.mxu0 %v102
    %259 = vmatmul.f32.gmra.mxu0 %v187
    %v260 = vpop.f32.mrf.mxu0
    %v261 = vadd.f32 0.0, %v260
    %262 = vdwg.mxu0
    %263 = vmatpush.msra.mxu0 0.0
    %264 = vmatpush.msra.mxu0 0.0
    %265 = vmatpush.msra.mxu0 0.0
    %266 = vmatpush.msra.mxu0 0.0
    %267 = vmatpush.msra.mxu0 %v198
    %268 = vmatpush.msra.mxu0 %v180
    %269 = vmatpush.msra.mxu0 %v177
    %270 = vmatpush.msra.mxu0 %v174
    %271 = vmatpush.msra.mxu0 %v171
    %272 = vmatpush.msra.mxu0 %v168
    %273 = vmatpush.msra.mxu0 %v165
    %274 = vmatpush.msra.mxu0 %v162
    %275 = vmatpush.msra.mxu0 %v159
    %276 = vmatpush.msra.mxu0 %v156
    %277 = vmatpush.msra.mxu0 %v153
    %278 = vmatpush.msra.mxu0 %v150
    %279 = vmatmul.f32.gmra.mxu0 %v191
    %v280 = vpop.f32.mrf.mxu0
    %v281 = vadd.f32 %v261, %v280
    %282 = vdwg.mxu0
    %283 = vmatpush.msra.mxu0 %v148
    %284 = vmatpush.msra.mxu0 %v145
    %285 = vmatpush.msra.mxu0 %v142
    %286 = vmatpush.msra.mxu0 %v139
    %287 = vmatpush.msra.mxu0 %v136
    %288 = vmatpush.msra.mxu0 %v133
    %289 = vmatpush.msra.mxu0 %v130
    %290 = vmatpush.msra.mxu0 %v127
    %291 = vmatpush.msra.mxu0 %v124
    %292 = vmatpush.msra.mxu0 %v121
    %293 = vmatpush.msra.mxu0 %v118
    %294 = vmatpush.msra.mxu0 %v115
    %295 = vmatpush.msra.mxu0 %v112
    %296 = vmatpush.msra.mxu0 %v109
    %297 = vmatpush.msra.mxu0 %v106
    %298 = vmatpush.msra.mxu0 %v103
    %299 = vmatmul.f32.gmra.mxu0 %v187
    %v300 = vpop.f32.mrf.mxu0
    %v301 = vadd.f32 0.0, %v300
    %302 = vdwg.mxu0
    %303 = vmatpush.msra.mxu0 0.0
    %304 = vmatpush.msra.mxu0 0.0
    %305 = vmatpush.msra.mxu0 0.0
    %306 = vmatpush.msra.mxu0 0.0
    %307 = vmatpush.msra.mxu0 %v201
    %308 = vmatpush.msra.mxu0 %v181
    %309 = vmatpush.msra.mxu0 %v178
    %310 = vmatpush.msra.mxu0 %v175
    %311 = vmatpush.msra.mxu0 %v172
    %312 = vmatpush.msra.mxu0 %v169
    %313 = vmatpush.msra.mxu0 %v166
    %314 = vmatpush.msra.mxu0 %v163
    %315 = vmatpush.msra.mxu0 %v160
    %316 = vmatpush.msra.mxu0 %v157
    %317 = vmatpush.msra.mxu0 %v154
    %318 = vmatpush.msra.mxu0 %v151
    %319 = vmatmul.f32.gmra.mxu0 %v191
    %v320 = vpop.f32.mrf.mxu0
    %v321 = vadd.f32 %v301, %v320
    %322 = vdwg.mxu0
    %v324 = vperm.slane %v99, 0
    %v325 = vperm.slane %v99, 1
    %v326 = vperm.slane %v99, 2
    %v330 = vadd.f32 %v324, %v241
    %v331 = vadd.f32 %v325, %v281
    %v332 = vadd.f32 %v326, %v321
    %v336 = vrot.slane %v331, 6
    %v337 = vrot.slane %v332, 4
    %vm338 = vcmask 1041408
    %v339 = vsel %vm338, %v330, %v336
    %vm340 = vcmask 1043456
    %v341 = vsel %vm340, %v339, %v337
    %343 = vst [vmem:[#allocation11] sm:$0x3f] %v341
    %p344 = scmp.eq.s32.totalorder 0, 0
    // Predicated region
    $region46: #{tpu_custom_call.1} parent=1 // pred_check
      %p345 = pneg %p344
    $region47: #{tpu_custom_call.1} parent=1 // pred_check_branch
      %347 = sbr.rel (%p345) target = $region49
    $region48: #{tpu_custom_call.1} parent=1 // pred_region
      %v348 = vld [vmem:[%s5] sm:$0x1]
      %v349 = vld [vmem:[#allocation5] sm:$0x3]
      %v350 = vld [vmem:[#allocation10] sm:$0xff]
      %v351 = vld [vmem:[#allocation10 + $0x8] sm:$0x3]
      %vm352 = vcmask 80896
      %v354 = vsel %vm352, %v349, 0
      %v357 = vsel %vm338, %v351, 0
      %359 = vmatpush.msra.mxu0 0.0
      %360 = vmatpush.msra.mxu0 0.0
      %361 = vmatpush.msra.mxu0 0.0
      %362 = vmatpush.msra.mxu0 0.0
      %363 = vmatpush.msra.mxu0 0.0
      %364 = vmatpush.msra.mxu0 0.0
      %365 = vmatpush.msra.mxu0 0.0
      %366 = vmatpush.msra.mxu0 0.0
      %367 = vmatpush.msra.mxu0 0.0
      %368 = vmatpush.msra.mxu0 0.0
      %369 = vmatpush.msra.mxu0 0.0
      %370 = vmatpush.msra.mxu0 0.0
      %371 = vmatpush.msra.mxu0 0.0
      %372 = vmatpush.msra.mxu0 0.0
      %373 = vmatpush.msra.mxu0 %v357
      %374 = vmatpush.msra.mxu0 %v350
      %375 = vmatmul.f32.gmra.mxu0 %v354
      %v376 = vpop.f32.mrf.mxu0
      %v377 = vadd.f32 0.0, %v376
      %378 = vdwg.mxu0
      %v380 = vperm.slane %v348, 0
      %v382 = vadd.f32 %v380, %v377
      %vm383 = vcmask 582656
      %384 = vst.msk [vmem:[#allocation12] sm:$0x3] %vm383, %v382
    $region49: #{tpu_custom_call.1} parent=1 // pred_fallthru
      _
    // Predicated region
    $region50: #{tpu_custom_call.1} parent=1 // pred_check
      _
    $region51: #{tpu_custom_call.1} parent=1 // pred_check_branch
      %386 = sbr.rel (0) target = $region53
    $region52: #{tpu_custom_call.1} parent=1 // pred_region
      %388 = vsyncadd [#allocation4], 0
      %s390 = sshll.u32 [#allocation11], 4
      %s391 = int_to_ptr.vmem [resolvable:$true] %s390
      %s392 = sshll.u32 %s6, 4
      %s393 = int_to_ptr.hbm [resolvable:$true] %s392
      %395 = dma.vmem_to_hbm [thread:$0]  %s391, 96, %s393, [#allocation4]
    $region53: #{tpu_custom_call.1} parent=1 // pred_fallthru
      _
    // Predicated region
    $region54: #{tpu_custom_call.1} parent=1 // pred_check
      _
    $region55: #{tpu_custom_call.1} parent=1 // pred_check_branch
      %397 = sbr.rel (0) target = $region57
    $region56: #{tpu_custom_call.1} parent=1 // pred_region
      %399 = vsyncadd [#allocation13], 0
      %s401 = sshll.u32 [#allocation12], 4
      %s402 = int_to_ptr.vmem [resolvable:$true] %s401
      %s403 = sshll.u32 %s7, 4
      %s404 = int_to_ptr.hbm [resolvable:$true] %s403
      %406 = dma.vmem_to_hbm [thread:$0]  %s402, 32, %s404, [#allocation13]
    $region57: #{tpu_custom_call.1} parent=1 // pred_fallthru
      _
    // Predicated region
    $region58: #{tpu_custom_call.1} parent=1 // pred_check
      _
    $region59: #{tpu_custom_call.1} parent=1 // pred_check_branch
      %408 = sbr.rel (0) target = $region61
    $region60: #{tpu_custom_call.1} parent=1 // pred_region
      %410 = dma.done [#allocation4], 96
    $region61: #{tpu_custom_call.1} parent=1 // pred_fallthru
      _
    // Predicated region
    $region62: #{tpu_custom_call.1} parent=1 // pred_check
      _
    $region63: #{tpu_custom_call.1} parent=1 // pred_check_branch
      %412 = sbr.rel (0) target = $region65
    $region64: #{tpu_custom_call.1} parent=1 // pred_region
      %414 = dma.done [#allocation13], 32
    $region65: #{tpu_custom_call.1} parent=1 // pred_fallthru
      _
    %415 = vsyncpa [#allocation3], 1
    %416 = vsyncpa [#allocation6], 1
    %417 = vsyncpa [#allocation9], 1
    %418 = vsyncpa [#allocation4], 1
    %419 = vsyncpa [#allocation13], 1

</llo_original>
